<compile_context>
chip_gen: v7x
topology: tpu7x:2x2x1
jax: 0.10.0
libtpu: 0.0.40
codegen_flags: <defaults>
</compile_context>

<pallas_src>
import functools

import jax
import jax.numpy as jnp
from jax.experimental import pallas as pl
from jax.experimental.pallas import tpu as pltpu


def _round_up(x, m):
    return ((x + m - 1) // m) * m


# ------------------------- Pallas kernel (hot path) -------------------------
def _fused_convt_sigmoid_kernel(x_ref, w_ref, b_ref, o_ref, *,
                                nb, cin, l_out, pad_l, wp):
    """One batch of `nb` images per grid step.

    x_ref: (nb, cin, l_ext)      halo-padded, flattened, zero-extended inputs
    w_ref: (4*cout, 9*cin)       packed (phase, tap) weights (zero blocks for
                                 the taps a phase does not use)
    b_ref: (4*cout, 1)           bias, repeated once per parity phase
    o_ref: (nb, 4*cout, l_out)   4 output parity phases on sublanes, flattened
                                 padded-spatial grid on lanes (lane-dense)
    """
    # Fused im2col: build the (9*cin, nb*l_out) RHS from static lane-offset
    # slices of the VMEM-resident input (no HBM round trip, no dilated buffer).
    tap_rows = []
    for dy in (-1, 0, 1):
        for dx in (-1, 0, 1):
            off = pad_l + dy * wp + dx
            per_img = [x_ref[i, :, off:off + l_out] for i in range(nb)]
            tap_rows.append(per_img[0] if nb == 1
                            else jnp.concatenate(per_img, axis=1))
    rhs = jnp.concatenate(tap_rows, axis=0)                # (9*cin, nb*l_out)

    # Single MXU issue covering all 4 parity phases of all nb images.
    acc = jnp.dot(w_ref[...], rhs, preferred_element_type=jnp.float32)

    # f32 epilogue: one bias broadcast + one sigmoid over the whole tile.
    y = jax.nn.sigmoid(acc + b_ref[...].astype(jnp.float32))

    # Tile-aligned stores: full sublane extent, lane offsets multiples of 128.
    for i in range(nb):
        o_ref[i] = y[:, i * l_out:(i + 1) * l_out].astype(o_ref.dtype)


# ------------------------------- JAX glue -----------------------------------
def conv_transpose2d_sigmoid(x_nchw, weight, bias, *, operand_dtype=None,
                             images_per_step=None):
    """ConvTranspose2d(kernel=4, stride=2, padding=1) + Sigmoid.

    x_nchw: (N, Cin, H, W); weight: (Cin, Cout, 4, 4) (PyTorch layout);
    bias: (Cout,).  Returns (N, Cout, 2H, 2W) in NCHW, matching PyTorch.
    """
    N, Cin, H, W = x_nchw.shape
    wCin, Cout, KH, KW = weight.shape
    assert (wCin, KH, KW) == (Cin, 4, 4)

    Hp, Wp = H + 2, W + 2                 # 1-ring zero halo
    Lvalid = Hp * Wp
    Lout = _round_up(Lvalid, 128)         # lane-dense output width
    PadL = Wp + 1                         # worst-case negative shift (dy=dx=-1)
    Lext = _round_up(PadL + Lout + Wp + 1, 128)

    # Batch size per grid step: amortize per-step overhead & tiny DMAs, keep
    # >= 2 grid steps so v7x's two TensorCores both get work, stay inside the
    # default scoped-VMEM (double-buffered in + out blocks).
    if images_per_step is None:
        per_img_bytes = 2 * 4 * (Cin * Lext + 4 * Cout * Lout)
        vmem_cap = max(1, (16 << 20) // per_img_bytes)
        images_per_step = min(vmem_cap, max(1, pl.cdiv(N, 2)))
    Nb = images_per_step
    n_steps = pl.cdiv(N, Nb)
    Npad = n_steps * Nb

    # Tiny wrapper-side prep (all O(input) sized; no dilated / im2col blow-up).
    xp = jnp.pad(x_nchw, ((0, Npad - N), (0, 0), (1, 1), (1, 1)))
    xf = xp.reshape(Npad, Cin, Lvalid)                             # contiguous
    x_ext = jnp.pad(xf, ((0, 0), (0, 0), (PadL, Lext - PadL - Lvalid)))

    # Pack all 16 (phase, tap) weight blocks into ONE (4*Cout, 9*Cin) matrix.
    # Output parity phase (ry, rx) uses taps dy in {ry-1, ry}, dx in {rx-1, rx}
    # with ConvTranspose kernel index k = r + 1 - 2*d; all other taps are zero.
    phases = ((0, 0), (0, 1), (1, 0), (1, 1))
    taps = [(dy, dx) for dy in (-1, 0, 1) for dx in (-1, 0, 1)]
    zero_blk = jnp.zeros((Cout, Cin), weight.dtype)
    rows = []
    for ry, rx in phases:
        blks = []
        for dy, dx in taps:
            if dy in (ry - 1, ry) and dx in (rx - 1, rx):
                ky, kx = ry + 1 - 2 * dy, rx + 1 - 2 * dx
                blks.append(weight[:, :, ky, kx].T)                # (Cout, Cin)
            else:
                blks.append(zero_blk)
        rows.append(jnp.concatenate(blks, axis=1))                 # (Cout, 9*Cin)
    w_pack = jnp.concatenate(rows, axis=0)                         # (4*Cout, 9*Cin)
    b_pack = jnp.tile(bias.reshape(Cout, 1), (4, 1)).astype(jnp.float32)

    if operand_dtype is not None:   # bf16 MXU operands (v6e/v7x production default)
        x_ext = x_ext.astype(operand_dtype)
        w_pack = w_pack.astype(operand_dtype)

    kernel = functools.partial(_fused_convt_sigmoid_kernel,
                               nb=Nb, cin=Cin, l_out=Lout, pad_l=PadL, wp=Wp)

    out_flat = pl.pallas_call(
        kernel,
        out_shape=jax.ShapeDtypeStruct((Npad, 4 * Cout, Lout), jnp.float32),
        grid=(n_steps,),
        in_specs=[
            pl.BlockSpec((Nb, Cin, Lext), lambda s: (s, 0, 0)),      # image batch
            pl.BlockSpec((4 * Cout, 9 * Cin), lambda s: (0, 0)),     # weights (grid-invariant)
            pl.BlockSpec((4 * Cout, 1), lambda s: (0, 0)),           # bias (grid-invariant)
        ],
        out_specs=pl.BlockSpec((Nb, 4 * Cout, Lout), lambda s: (s, 0, 0)),
        compiler_params=pltpu.CompilerParams(
            dimension_semantics=("parallel",)),
    )(x_ext, w_pack, b_pack)

    # Pixel-shuffle the 4 parity phases back into NCHW (output-sized, cheap at
    # this scale).
    # TODO(synk): at production sizes fold this interleave into the kernel's
    # output layout (or a second tiny kernel) to avoid an extra HBM round trip.
    out = out_flat[:N, :, :Lvalid].reshape(N, 2, 2, Cout, Hp, Wp)
    out = out[:, :, :, :, 1:H + 1, 1:W + 1]                        # drop halo
    out = out.transpose(0, 3, 4, 1, 5, 2).reshape(N, Cout, 2 * H, 2 * W)
    return out


def pv4_inversion_forward(x, weight, bias):
    """Forward of pv4_Inversion_4(block_idx=1): decoder(x)."""
    return conv_transpose2d_sigmoid(x, weight, bias)


# ---------------------------- reference (check) ------------------------------
def _reference(x, weight, bias):
    w_oihw = jnp.transpose(weight[:, :, ::-1, ::-1], (1, 0, 2, 3))  # (Cout, Cin, 4, 4)
    y = jax.lax.conv_general_dilated(
        x, w_oihw, window_strides=(1, 1),
        padding=((2, 2), (2, 2)), lhs_dilation=(2, 2),
        dimension_numbers=("NCHW", "OIHW", "NCHW"))
    y = y + bias.reshape(1, -1, 1, 1)
    return jax.nn.sigmoid(y)


if __name__ == "__main__":
    # pv4_Inversion_4(nc=3, ngf=4, ndf=4, nz=8, img_size=16, block_idx=1)
    nc_, ngf, ndf, nz, img_size, block_idx = 3, 4, 4, 8, 16, 1
    N = 2
    H = W = img_size // 2  # spatial_size for block_idx == 1

    key = jax.random.PRNGKey(0)
    kx, kw, kb = jax.random.split(key, 3)
    x = jax.random.normal(kx, (N, ndf, H, W), dtype=jnp.float32)
    # PyTorch ConvTranspose2d weight layout (Cin, Cout, kH, kW)
    weight = jax.random.normal(kw, (ndf, nc_, 4, 4), dtype=jnp.float32) * 0.1
    bias = jax.random.normal(kb, (nc_,), dtype=jnp.float32) * 0.1

    out = pv4_inversion_forward(x, weight, bias)
    out = jax.block_until_ready(out)

    assert out.shape == (N, nc_, img_size, img_size), out.shape
    ref = _reference(x, weight, bias)
    assert jnp.allclose(out, ref, atol=1e-5, rtol=1e-5), \
        float(jnp.max(jnp.abs(out - ref)))

    print("KERNEL_OK")
</pallas_src>

<mosaic_0001>
module attributes {stable_mosaic.version = 11 : i64} {
  func.func @_fused_convt_sigmoid_kernel(%arg0: i32, %arg1: memref<1x4x256xf32, #tpu.memory_space<vmem>>, %arg2: memref<12x36xf32, #tpu.memory_space<vmem>>, %arg3: memref<12x1xf32, #tpu.memory_space<vmem>>, %arg4: memref<1x12x128xf32, #tpu.memory_space<vmem>>) attributes {dimension_semantics = [#tpu.dimension_semantics<parallel>], iteration_bounds = array<i64: 2>, scalar_prefetch = 0 : i64, scratch_operands = 0 : i64, tpu.core_type = #tpu.core_type<tc>, window_params = [{transform_indices = @transform_0, window_bounds = array<i64: 1, 4, 256>}, {pipeline_mode = #tpu.pipeline_mode<synchronous>, transform_indices = @transform_1, window_bounds = array<i64: 12, 36>}, {pipeline_mode = #tpu.pipeline_mode<synchronous>, transform_indices = @transform_2, window_bounds = array<i64: 12, 1>}, {transform_indices = @transform_3, window_bounds = array<i64: 1, 12, 128>}]} {
    %c0 = arith.constant 0 : index
    %c0_0 = arith.constant 0 : index
    %c0_1 = arith.constant 0 : index
    %0 = vector.load %arg1[%c0, %c0_0, %c0_1] : memref<1x4x256xf32, #tpu.memory_space<vmem>>, vector<1x4x128xf32>
    %1 = vector.shape_cast %0 : vector<1x4x128xf32> to vector<4x128xf32>
    %c0_2 = arith.constant 0 : index
    %c0_3 = arith.constant 0 : index
    %c1 = arith.constant 1 : index
    %2 = vector.load %arg1[%c0_2, %c0_3, %c1] : memref<1x4x256xf32, #tpu.memory_space<vmem>>, vector<1x4x128xf32>
    %3 = vector.shape_cast %2 : vector<1x4x128xf32> to vector<4x128xf32>
    %c0_4 = arith.constant 0 : index
    %c0_5 = arith.constant 0 : index
    %c2 = arith.constant 2 : index
    %4 = vector.load %arg1[%c0_4, %c0_5, %c2] : memref<1x4x256xf32, #tpu.memory_space<vmem>>, vector<1x4x128xf32>
    %5 = vector.shape_cast %4 : vector<1x4x128xf32> to vector<4x128xf32>
    %c0_6 = arith.constant 0 : index
    %c0_7 = arith.constant 0 : index
    %c10 = arith.constant 10 : index
    %6 = vector.load %arg1[%c0_6, %c0_7, %c10] : memref<1x4x256xf32, #tpu.memory_space<vmem>>, vector<1x4x128xf32>
    %7 = vector.shape_cast %6 : vector<1x4x128xf32> to vector<4x128xf32>
    %c0_8 = arith.constant 0 : index
    %c0_9 = arith.constant 0 : index
    %c11 = arith.constant 11 : index
    %8 = vector.load %arg1[%c0_8, %c0_9, %c11] : memref<1x4x256xf32, #tpu.memory_space<vmem>>, vector<1x4x128xf32>
    %9 = vector.shape_cast %8 : vector<1x4x128xf32> to vector<4x128xf32>
    %c0_10 = arith.constant 0 : index
    %c0_11 = arith.constant 0 : index
    %c12 = arith.constant 12 : index
    %10 = vector.load %arg1[%c0_10, %c0_11, %c12] : memref<1x4x256xf32, #tpu.memory_space<vmem>>, vector<1x4x128xf32>
    %11 = vector.shape_cast %10 : vector<1x4x128xf32> to vector<4x128xf32>
    %c0_12 = arith.constant 0 : index
    %c0_13 = arith.constant 0 : index
    %c20 = arith.constant 20 : index
    %12 = vector.load %arg1[%c0_12, %c0_13, %c20] : memref<1x4x256xf32, #tpu.memory_space<vmem>>, vector<1x4x128xf32>
    %13 = vector.shape_cast %12 : vector<1x4x128xf32> to vector<4x128xf32>
    %c0_14 = arith.constant 0 : index
    %c0_15 = arith.constant 0 : index
    %c21 = arith.constant 21 : index
    %14 = vector.load %arg1[%c0_14, %c0_15, %c21] : memref<1x4x256xf32, #tpu.memory_space<vmem>>, vector<1x4x128xf32>
    %15 = vector.shape_cast %14 : vector<1x4x128xf32> to vector<4x128xf32>
    %c0_16 = arith.constant 0 : index
    %c0_17 = arith.constant 0 : index
    %c22 = arith.constant 22 : index
    %16 = vector.load %arg1[%c0_16, %c0_17, %c22] : memref<1x4x256xf32, #tpu.memory_space<vmem>>, vector<1x4x128xf32>
    %17 = vector.shape_cast %16 : vector<1x4x128xf32> to vector<4x128xf32>
    %18 = tpu.concatenate %1, %3, %5, %7, %9, %11, %13, %15, %17 in 0 : vector<4x128xf32>, vector<4x128xf32>, vector<4x128xf32>, vector<4x128xf32>, vector<4x128xf32>, vector<4x128xf32>, vector<4x128xf32>, vector<4x128xf32>, vector<4x128xf32> -> vector<36x128xf32>
    %c0_18 = arith.constant 0 : index
    %c0_19 = arith.constant 0 : index
    %19 = vector.load %arg2[%c0_18, %c0_19] : memref<12x36xf32, #tpu.memory_space<vmem>>, vector<12x36xf32>
    %cst = arith.constant dense<0.000000e+00> : vector<12x128xf32>
    %20 = tpu.matmul %19, %18, %cst {dimension_numbers = #tpu.dot_dimension_numbers<[1], [0], [0], [1], [0, 0, 1, 1], [], []>} : vector<12x36xf32>, vector<36x128xf32>, vector<12x128xf32> -> vector<12x128xf32>
    %c0_20 = arith.constant 0 : index
    %c0_21 = arith.constant 0 : index
    %21 = vector.load %arg3[%c0_20, %c0_21] : memref<12x1xf32, #tpu.memory_space<vmem>>, vector<12x1xf32>
    %22 = vector.broadcast %21 : vector<12x1xf32> to vector<12x128xf32>
    %23 = arith.addf %20, %22 : vector<12x128xf32>
    %24 = arith.negf %23 : vector<12x128xf32>
    %25 = math.exp %24 : vector<12x128xf32>
    %cst_22 = arith.constant 1.000000e+00 : f32
    %26 = vector.broadcast %cst_22 : f32 to vector<12x128xf32>
    %27 = arith.addf %26, %25 : vector<12x128xf32>
    %28 = arith.divf %26, %27 : vector<12x128xf32>
    %c0_23 = arith.constant 0 : index
    %c0_24 = arith.constant 0 : index
    %c0_25 = arith.constant 0 : index
    %29 = vector.load %arg4[%c0_23, %c0_24, %c0_25] : memref<1x12x128xf32, #tpu.memory_space<vmem>>, vector<1x12x128xf32>
    %30 = vector.shape_cast %29 : vector<1x12x128xf32> to vector<12x128xf32>
    %31 = vector.shape_cast %28 : vector<12x128xf32> to vector<1x12x128xf32>
    tpu.vector_store %arg4[%c0_23, %c0_24, %c0_25], %31 {strides = array<i32>} : memref<1x12x128xf32, #tpu.memory_space<vmem>>, vector<1x12x128xf32>,
    return
  }
  func.func @transform_0(%arg0: i32) -> (i32, i32, i32) {
    %c0_i32 = arith.constant 0 : i32
    %c0_i32_0 = arith.constant 0 : i32
    %c0_i32_1 = arith.constant 0 : i32
    return %arg0, %c0_i32, %c0_i32_0 : i32, i32, i32
  }
  func.func @transform_1(%arg0: i32) -> (i32, i32) {
    %c0_i32 = arith.constant 0 : i32
    %c0_i32_0 = arith.constant 0 : i32
    %c0_i32_1 = arith.constant 0 : i32
    return %c0_i32, %c0_i32_0 : i32, i32
  }
  func.func @transform_2(%arg0: i32) -> (i32, i32) {
    %c0_i32 = arith.constant 0 : i32
    %c0_i32_0 = arith.constant 0 : i32
    %c0_i32_1 = arith.constant 0 : i32
    return %c0_i32, %c0_i32_0 : i32, i32
  }
  func.func @transform_3(%arg0: i32) -> (i32, i32, i32) {
    %c0_i32 = arith.constant 0 : i32
    %c0_i32_0 = arith.constant 0 : i32
    %c0_i32_1 = arith.constant 0 : i32
    return %arg0, %c0_i32, %c0_i32_0 : i32, i32, i32
  }
}

</mosaic_0001>

<llo_original>
// kernel: tpu_custom_call.1
$region0: #{tpu_custom_call.1}
  #allocation0 [shape = 'u32[]', space=smem, size = 0x4, offset = 0x4, fixed_abs, tag = 'smem constant byte address 0x4 - core index']
  #allocation1 [shape = 'u32[144,128]{1,0:T(1,128)}', space=vmem, size = 0x12000, scoped, tag = 'internal scratch']
  %s0 = inlined_call_operand.vmem [shape: f32[2,4,256], index: 0, kind: input, shape index: {}]
  %s1 = inlined_call_operand.hbm [shape: f32[12,36], index: 1, kind: input, shape index: {}]
  %s2 = inlined_call_operand.vmem [shape: f32[12,1], index: 2, kind: input, shape index: {}]
  %s3 = inlined_call_operand.vmem [shape: f32[2,12,128], index: 3, kind: output, shape index: {}]
  %s4 = sld [smem:[#allocation0]]
  $region49: #{tpu_custom_call.1} parent=0
    _
  %s6 = ssub.s32 1, %s4
  %s7 = scalar_select 0, %s6, %s4
  $region1: #{tpu_custom_call.1} parent=0
    #allocation2 [shape = 'u8[8192]{0}', space=vmem, size = 0x2000, scoped, tag = 'input window, operand 1, single buffered']
    #allocation3 [shape = 's32[2]{0}', space=sflag, size = 0x8, scoped, tag = 'scoped memory for tpu_custom_call.1']
    %8 = vsyncpa [#allocation3], 0
    loop: start=0, step=1, limit=4
    $region2: #{tpu_custom_call.1} parent=1 // loop_pre_header
      _
    $region3: #{tpu_custom_call.1} parent=1 // loop_header
      %s10 = sphi 0, %s14
      %p11 = scmp.ge.s32.totalorder %s10, 4
      %s20 = sphi 0, %s22
      %s23 = sphi 0, %s20
      %s24 = sphi 0, %s23
      %s40 = sphi 0, %s24
      %s44 = sphi 0, %s44
      %s46 = sphi 0, %s44
      %s47 = sphi 0, %s46
      %s61 = sphi 0, %s47
      %s65 = sphi 0, %s65
      %s67 = sphi 0, %s65
      %s68 = sphi 0, %s67
      %s82 = sphi 0, %s68
      %s88 = sphi 0, %s90
      %s91 = sphi 0, %s88
      %s92 = sphi 0, %s91
      %s108 = sphi 0, %s92
    $region4: #{tpu_custom_call.1} parent=1 // loop_header_branch
      %13 = sbr.rel (%p11) target = $region8
    $region5: #{tpu_custom_call.1} parent=1 // loop_body
      %s15 = ssub.s32 %s10, 1
      %s16 = ssub.s32 %s10, 2
      %s17 = sadd.s32 %s10, 1
      %s18 = ssub.s32 %s10, %s17
      %p19 = scmp.eq.s32.totalorder %s18, 0
      %s21 = sadd.s32 %s20, 1
      %s22 = scalar_select %p19, %s20, %s21
      %p25 = pneg %p19
      %p26 = scmp.eq.s32.totalorder %s10, 1
      %p27 = por %p25, %p26
      %p28 = scmp.ne.s32.totalorder %s20, %s23
      %p29 = scmp.eq.s32.totalorder %s10, 0
      %p30 = por %p28, %p29
      %p31 = scmp.ne.s32.totalorder %s20, %s23
      %p32 = scmp.eq.s32.totalorder %s15, 1
      %p33 = por %p31, %p32
      %p34 = scmp.ne.s32.totalorder %s23, %s24
      %p35 = scmp.eq.s32.totalorder %s15, 0
      %p36 = por %p34, %p35
      %p37 = scmp.ne.s32.totalorder %s23, %s24
      %p38 = scmp.eq.s32.totalorder %s16, 1
      %p39 = por %p37, %p38
      %p41 = scmp.ne.s32.totalorder %s24, %s40
      %p42 = scmp.eq.s32.totalorder %s16, 0
      %p43 = por %p41, %p42
      %s45 = sadd.s32 %s44, 1
      %p48 = scmp.eq.s32.totalorder %s10, 1
      %p49 = scmp.ne.s32.totalorder %s44, %s46
      %p50 = scmp.eq.s32.totalorder %s10, 0
      %p51 = por %p49, %p50
      %p52 = scmp.ne.s32.totalorder %s44, %s46
      %p53 = scmp.eq.s32.totalorder %s15, 1
      %p54 = por %p52, %p53
      %p55 = scmp.ne.s32.totalorder %s46, %s47
      %p56 = scmp.eq.s32.totalorder %s15, 0
      %p57 = por %p55, %p56
      %p58 = scmp.ne.s32.totalorder %s46, %s47
      %p59 = scmp.eq.s32.totalorder %s16, 1
      %p60 = por %p58, %p59
      %p62 = scmp.ne.s32.totalorder %s47, %s61
      %p63 = scmp.eq.s32.totalorder %s16, 0
      %p64 = por %p62, %p63
      %s66 = sadd.s32 %s65, 1
      %p69 = scmp.eq.s32.totalorder %s10, 1
      %p70 = scmp.ne.s32.totalorder %s65, %s67
      %p71 = scmp.eq.s32.totalorder %s10, 0
      %p72 = por %p70, %p71
      %p73 = scmp.ne.s32.totalorder %s65, %s67
      %p74 = scmp.eq.s32.totalorder %s15, 1
      %p75 = por %p73, %p74
      %p76 = scmp.ne.s32.totalorder %s67, %s68
      %p77 = scmp.eq.s32.totalorder %s15, 0
      %p78 = por %p76, %p77
      %p79 = scmp.ne.s32.totalorder %s67, %s68
      %p80 = scmp.eq.s32.totalorder %s16, 1
      %p81 = por %p79, %p80
      %p83 = scmp.ne.s32.totalorder %s68, %s82
      %p84 = scmp.eq.s32.totalorder %s16, 0
      %p85 = por %p83, %p84
      %s86 = ssub.s32 %s10, %s17
      %p87 = scmp.eq.s32.totalorder %s86, 0
      %s89 = sadd.s32 %s88, 1
      %s90 = scalar_select %p87, %s88, %s89
      %p93 = pneg %p87
      %p94 = scmp.eq.s32.totalorder %s10, 1
      %p95 = por %p93, %p94
      %p96 = scmp.ne.s32.totalorder %s88, %s91
      %p97 = scmp.eq.s32.totalorder %s10, 0
      %p98 = por %p96, %p97
      %p99 = scmp.ne.s32.totalorder %s88, %s91
      %p100 = scmp.eq.s32.totalorder %s15, 1
      %p101 = por %p99, %p100
      %p102 = scmp.ne.s32.totalorder %s91, %s92
      %p103 = scmp.eq.s32.totalorder %s15, 0
      %p104 = por %p102, %p103
      %p105 = scmp.ne.s32.totalorder %s91, %s92
      %p106 = scmp.eq.s32.totalorder %s16, 1
      %p107 = por %p105, %p106
      %p109 = scmp.ne.s32.totalorder %s92, %s108
      %p110 = scmp.eq.s32.totalorder %s16, 0
      %p111 = por %p109, %p110
      %p112 = scmp.le.s32.totalorder 1, %s10
      %p113 = scmp.lt.s32.totalorder %s10, 3
      %p114 = pnand %p112, %p113
      %p115 = pneg %p114
      // Predicated region
      $region9: #{tpu_custom_call.1} parent=5 // pred_check
        _
      $region10: #{tpu_custom_call.1} parent=5 // pred_check_branch
        %117 = sbr.rel (%p114) target = $region12
      $region11: #{tpu_custom_call.1} parent=5 // pred_region
        %s118 = ssub.s32 %s10, 1
        // Predicated region
        $region13: #{tpu_custom_call.1} parent=11 // pred_check
          %p119 = pneg %p57
        $region14: #{tpu_custom_call.1} parent=11 // pred_check_branch
          %121 = sbr.rel (%p119) target = $region16
        $region15: #{tpu_custom_call.1} parent=11 // pred_region
          %s123 = ssub.s32 256, 256
          %124 = vsyncadd [#allocation3], %s123
          %s125 = sshll.u32 [#allocation2], 4
          %s126 = int_to_ptr.vmem [resolvable:$true] %s125
          %131 = dma.hbm_to_vmem [thread:$0]  %s1, 256, %s126, [#allocation3], 128, 128, 8
        $region16: #{tpu_custom_call.1} parent=11 // pred_fallthru
          _
        // Predicated region
        $region17: #{tpu_custom_call.1} parent=11 // pred_check
          %p132 = pneg %p78
        $region18: #{tpu_custom_call.1} parent=11 // pred_check_branch
          %134 = sbr.rel (%p132) target = $region20
        $region19: #{tpu_custom_call.1} parent=11 // pred_region
          _
        $region20: #{tpu_custom_call.1} parent=11 // pred_fallthru
          _
      $region12: #{tpu_custom_call.1} parent=5 // pred_fallthru
        _
      %p135 = scmp.lt.s32.totalorder %s10, 2
      // Predicated region
      $region21: #{tpu_custom_call.1} parent=5 // pred_check
        %p136 = pneg %p135
      $region22: #{tpu_custom_call.1} parent=5 // pred_check_branch
        %138 = sbr.rel (%p136) target = $region24
      $region23: #{tpu_custom_call.1} parent=5 // pred_region
        // Predicated region
        $region25: #{tpu_custom_call.1} parent=23 // pred_check
          %p139 = pneg %p30
        $region26: #{tpu_custom_call.1} parent=23 // pred_check_branch
          %141 = sbr.rel (%p139) target = $region28
        $region27: #{tpu_custom_call.1} parent=23 // pred_region
          %p142 = scmp.lt.s32.totalorder %s10, 1
          %s143 = scalar_select %p142, %s10, 1
          %s144 = smul.addr %s143, 2
          %s145 = smul.addr %s144, 4
          %s146 = scalar_lea.vmem %s0, %s145
        $region28: #{tpu_custom_call.1} parent=23 // pred_fallthru
          _
      $region24: #{tpu_custom_call.1} parent=5 // pred_fallthru
        _
      %p147 = scmp.le.s32.totalorder 1, %s10
      %p148 = scmp.lt.s32.totalorder %s10, 3
      %p149 = pnand %p147, %p148
      %p150 = pneg %p149
      // Predicated region
      $region29: #{tpu_custom_call.1} parent=5 // pred_check
        _
      $region30: #{tpu_custom_call.1} parent=5 // pred_check_branch
        %152 = sbr.rel (%p149) target = $region32
      $region31: #{tpu_custom_call.1} parent=5 // pred_region
        %s153 = ssub.s32 %s10, 1
        // Predicated region
        $region33: #{tpu_custom_call.1} parent=31 // pred_check
          %p154 = pneg %p57
        $region34: #{tpu_custom_call.1} parent=31 // pred_check_branch
          %156 = sbr.rel (%p154) target = $region36
        $region35: #{tpu_custom_call.1} parent=31 // pred_region
          %157 = dma.done [#allocation3], 256
        $region36: #{tpu_custom_call.1} parent=31 // pred_fallthru
          _
        %p158 = scmp.lt.s32.totalorder %s15, 1
        %s159 = scalar_select %p158, %s15, 1
        %s160 = smul.addr %s159, 2
        %s161 = smul.addr %s160, 4
        %s162 = scalar_lea.vmem %s0, %s161
        %p163 = pneg %p36
        %p164 = pneg %p33
        %p165 = pneg %p57
        %p166 = pneg %p54
        %p167 = pneg %p78
        %p168 = pneg %p75
        %p169 = pneg %p104
        %p170 = pneg %p101
        %p171 = scmp.lt.s32.totalorder %s15, 1
        %s172 = scalar_select %p171, %s15, 1
        %s173 = smul.addr %s172, 2
        %s174 = smul.addr %s173, 8
        %s175 = scalar_lea.vmem %s3, %s174
        %p176 = scmp.lt.s32.totalorder %s15, 1
        %s177 = scalar_select %p176, %s15, 1
        %s178 = smul.addr %s177, 2
        %s179 = smul.addr %s178, 4
        %s180 = scalar_lea.vmem %s0, %s179
        %p181 = scmp.lt.s32.totalorder %s15, 1
        %s182 = scalar_select %p181, %s15, 1
        %s183 = smul.addr %s182, 2
        %s184 = smul.addr %s183, 8
        %s185 = scalar_lea.vmem %s3, %s184
        %v186 = vld [vmem:[%s180] sm:$0xf]
        %v187 = vld [vmem:[%s180] sm:$0xff]
        %v189 = vcombine.low %v187, %v187
        %190 = vrot.lane.b32.xlu0 %v189, 127
        %v191 = vpop.permute.xlu0 %190
        %192 = vrot.lane.b32.xlu0 %v187, 127
        %v193 = vpop.permute.xlu0 %192
        %vm194 = vcmask 1039360
        %v195 = vsel %vm194, %v191, %v193
        %v197 = vcombine.high %v187, %v187
        %198 = vrot.lane.b32.xlu0 %v187, 126
        %v199 = vpop.permute.xlu0 %198
        %200 = vrot.lane.b32.xlu0 %v197, 126
        %v201 = vpop.permute.xlu0 %200
        %vm202 = vcmask 1031168
        %v203 = vsel %vm202, %v199, %v201
        %205 = vrot.lane.b32.xlu0 %v189, 118
        %v206 = vpop.permute.xlu0 %205
        %207 = vrot.lane.b32.xlu0 %v187, 118
        %v208 = vpop.permute.xlu0 %207
        %vm209 = vcmask 965632
        %v210 = vsel %vm209, %v206, %v208
        %212 = vrot.lane.b32.xlu0 %v187, 117
        %v213 = vpop.permute.xlu0 %212
        %214 = vrot.lane.b32.xlu0 %v197, 117
        %v215 = vpop.permute.xlu0 %214
        %vm216 = vcmask 957440
        %v217 = vsel %vm216, %v213, %v215
        %219 = vrot.lane.b32.xlu0 %v189, 116
        %v220 = vpop.permute.xlu0 %219
        %221 = vrot.lane.b32.xlu0 %v187, 116
        %v222 = vpop.permute.xlu0 %221
        %vm223 = vcmask 949248
        %v224 = vsel %vm223, %v220, %v222
        %226 = vrot.lane.b32.xlu0 %v187, 108
        %v227 = vpop.permute.xlu0 %226
        %228 = vrot.lane.b32.xlu0 %v197, 108
        %v229 = vpop.permute.xlu0 %228
        %vm230 = vcmask 883712
        %v231 = vsel %vm230, %v227, %v229
        %233 = vrot.lane.b32.xlu0 %v189, 107
        %v234 = vpop.permute.xlu0 %233
        %235 = vrot.lane.b32.xlu0 %v187, 107
        %v236 = vpop.permute.xlu0 %235
        %vm237 = vcmask 875520
        %v238 = vsel %vm237, %v234, %v236
        %240 = vrot.lane.b32.xlu0 %v187, 106
        %v241 = vpop.permute.xlu0 %240
        %242 = vrot.lane.b32.xlu0 %v197, 106
        %v243 = vpop.permute.xlu0 %242
        %vm244 = vcmask 867328
        %v245 = vsel %vm244, %v241, %v243
        %vm246 = vcmask 1043456
        %v247 = vsel %vm246, %v186, %v195
        %v248 = vsel %vm246, %v203, %v210
        %v249 = vsel %vm246, %v217, %v224
        %v250 = vsel %vm246, %v231, %v238
        %v251 = vld [vmem:[#allocation2] sm:$0xff]
        %v252 = vld [vmem:[#allocation2 + $0x8] sm:$0xf]
        %v253 = vld [vmem:[%s2] sm:$0xff]
        %v254 = vld [vmem:[%s2 + $0x8] sm:$0xf]
        %256 = vset.pattern.permute.xlu0 0
        %257 = vperm.xlu0 %256, %v253
        %v258 = vpop.permute.xlu0 %257
        %261 = vset.pattern.permute.xlu0 0
        %262 = vperm.xlu0 %261, %v254
        %v263 = vpop.permute.xlu0 %262
        %vm265 = vcmask 293888
        %v267 = vsel %vm265, %v251, 0
        %v270 = vsel %vm265, %v252, 0
        %v272 = vsel %vm246, %v245, 0
        %274 = vmatprep.subr.mxu0 0.0
        %275 = vmatpush1.msra.mxu0 %v247
        %276 = vmatprep.subr.mxu0 0.0
        %277 = vmatpush1.msra.mxu0 %v248
        %278 = vmatprep.subr.mxu0 0.0
        %279 = vmatpush1.msra.mxu0 %v249
        %280 = vmatprep.subr.mxu0 0.0
        %281 = vmatpush1.msra.mxu0 %v250
        %282 = vmatprep.subr.mxu0 0.0
        %283 = vmatpush1.msra.mxu0 %v272
        %284 = vmatprep.subr.mxu0 0.0
        %285 = vmatpush1.msra.mxu0 0.0
        %286 = vmatprep.subr.mxu0 0.0
        %287 = vmatpush1.msra.mxu0 0.0
        %288 = vmatprep.subr.mxu0 0.0
        %289 = vmatpush1.msra.mxu0 0.0
        %290 = vmatprep.subr.mxu0 0.0
        %291 = vmatpush1.msra.mxu0 0.0
        %292 = vmatprep.subr.mxu0 0.0
        %293 = vmatpush1.msra.mxu0 0.0
        %294 = vmatprep.subr.mxu0 0.0
        %295 = vmatpush1.msra.mxu0 0.0
        %296 = vmatprep.subr.mxu0 0.0
        %297 = vmatpush1.msra.mxu0 0.0
        %298 = vmatprep.subr.mxu0 0.0
        %299 = vmatpush1.msra.mxu0 0.0
        %300 = vmatprep.subr.mxu0 0.0
        %301 = vmatpush1.msra.mxu0 0.0
        %302 = vmatprep.subr.mxu0 0.0
        %303 = vmatpush1.msra.mxu0 0.0
        %304 = vmatprep.subr.mxu0 0.0
        %305 = vmatpush1.msra.mxu0 0.0
        %306 = vmatprep.subr.mxu0 0.0
        %307 = vmatpush1.msra.mxu0 0.0
        %308 = vmatprep.subr.mxu0 0.0
        %309 = vmatpush1.msra.mxu0 0.0
        %310 = vmatprep.subr.mxu0 0.0
        %311 = vmatpush1.msra.mxu0 0.0
        %312 = vmatprep.subr.mxu0 0.0
        %313 = vmatpush1.msra.mxu0 0.0
        %314 = vmatprep.subr.mxu0 0.0
        %315 = vmatpush1.msra.mxu0 0.0
        %316 = vmatprep.subr.mxu0 0.0
        %317 = vmatpush1.msra.mxu0 0.0
        %318 = vmatprep.subr.mxu0 0.0
        %319 = vmatpush1.msra.mxu0 0.0
        %320 = vmatprep.subr.mxu0 0.0
        %321 = vmatpush1.msra.mxu0 0.0
        %322 = vmatprep.subr.mxu0 0.0
        %323 = vmatpush1.msra.mxu0 0.0
        %324 = vmatprep.subr.mxu0 0.0
        %325 = vmatpush1.msra.mxu0 0.0
        %326 = vmatprep.subr.mxu0 0.0
        %327 = vmatpush1.msra.mxu0 0.0
        %328 = vmatprep.subr.mxu0 0.0
        %329 = vmatpush1.msra.mxu0 0.0
        %330 = vmatprep.subr.mxu0 0.0
        %331 = vmatpush1.msra.mxu0 0.0
        %332 = vmatprep.subr.mxu0 0.0
        %333 = vmatpush1.msra.mxu0 0.0
        %334 = vmatprep.subr.mxu0 0.0
        %335 = vmatpush1.msra.mxu0 0.0
        %336 = vmatprep.subr.mxu0 0.0
        %337 = vmatpush1.msra.mxu0 0.0
        %338 = vmatprep.mubr.f32.mxu0 0.0
        %339 = vmatmul.mubr.f32.gmra.mrb[0].mxu0 %v267
        %v340 = vpop.f32.mrb[0].mxu0
        %v341 = vadd.f32 %v258, %v340
        %v342 = vpop.f32.mrb[0].mxu0
        %343 = vmatprep.mubr.f32.mxu0 0.0
        %344 = vmatmul.mubr.f32.gmra.mrb[0].mxu0 %v270
        %v345 = vpop.f32.mrb[0].mxu0
        %v346 = vadd.f32 %v263, %v345
        %v347 = vpop.f32.mrb[0].mxu0
        %348 = vdwg.mxu0
        %v349 = vxor.u32 %v341, 2147483648
        %v350 = vxor.u32 %v346, 2147483648
        %v351 = vmul.f32 %v349, 1.442695
        %v352 = vpow.pop %v351
        %v353 = vmul.f32 %v350, 1.442695
        %v354 = vpow.pop %v353
        %v355 = vadd.f32 %v352, 1.0
        %v356 = vadd.f32 %v354, 1.0
        %v357 = vrcp.pop %v355
        %v358 = vmul.f32 1.0, %v357
        %v359 = vrcp.pop %v356
        %v360 = vmul.f32 1.0, %v359
        %361 = vst [vmem:[%s185] sm:$0xff] %v358
        %362 = vst [vmem:[%s185 + $0x8] sm:$0xf] %v360
        %p363 = scmp.lt.s32.totalorder %s15, 1
        %s364 = scalar_select %p363, %s15, 1
        %s365 = smul.addr %s364, 2
        %s366 = smul.addr %s365, 8
        %s367 = scalar_lea.vmem %s3, %s366
        // Predicated region
        $region37: #{tpu_custom_call.1} parent=31 // pred_check
          %p368 = pneg %p101
        $region38: #{tpu_custom_call.1} parent=31 // pred_check_branch
          %370 = sbr.rel (%p368) target = $region40
        $region39: #{tpu_custom_call.1} parent=31 // pred_region
          _
        $region40: #{tpu_custom_call.1} parent=31 // pred_fallthru
          _
      $region32: #{tpu_custom_call.1} parent=5 // pred_fallthru
        _
      %p371 = scmp.le.s32.totalorder 2, %s10
      // Predicated region
      $region41: #{tpu_custom_call.1} parent=5 // pred_check
        %p372 = pneg %p371
      $region42: #{tpu_custom_call.1} parent=5 // pred_check_branch
        %374 = sbr.rel (%p372) target = $region44
      $region43: #{tpu_custom_call.1} parent=5 // pred_region
        %s375 = ssub.s32 %s10, 2
        // Predicated region
        $region45: #{tpu_custom_call.1} parent=43 // pred_check
          %p376 = pneg %p107
        $region46: #{tpu_custom_call.1} parent=43 // pred_check_branch
          %378 = sbr.rel (%p376) target = $region48
        $region47: #{tpu_custom_call.1} parent=43 // pred_region
          %p379 = scmp.lt.s32.totalorder %s16, 1
          %s380 = scalar_select %p379, %s16, 1
          %s381 = smul.addr %s380, 2
          %s382 = smul.addr %s381, 8
          %s383 = scalar_lea.vmem %s3, %s382
        $region48: #{tpu_custom_call.1} parent=43 // pred_fallthru
          _
      $region44: #{tpu_custom_call.1} parent=5 // pred_fallthru
        _
    $region6: #{tpu_custom_call.1} parent=1 // loop_footer
      %s14 = sadd.s32 1, %s10
    $region7: #{tpu_custom_call.1} parent=1 // loop_footer_branch
      %9 = sbr.rel target = $region3
    $region8: #{tpu_custom_call.1} parent=1 // loop_exit
      _
    %384 = vsyncpa [#allocation3], 1
    %s385 = scalar_lea.sflag [#allocation3], 1
    %386 = vsyncpa %s385, 1

</llo_original>
